<compile_context>
chip_gen: v5e
topology: v5e:2x2
jax: 0.10.0
libtpu: 0.0.40
codegen_flags: <defaults>
</compile_context>

<pallas_src>
import math
import jax
import jax.numpy as jnp
from jax.experimental import pallas as pl
from jax.experimental.pallas import tpu as pltpu


def _round_up(x, m):
    return ((x + m - 1) // m) * m


def _policy_kernel(scale_ref, bias_ref,
                   x_ref, w1_ref, b1_ref, w2_ref, b2_ref, w3_ref, b3_ref,
                   out_ref):
    # x_ref: (TB, num_inputs) bf16; weights bf16 (pre-transposed (in, out));
    # biases/scale/bias/out are f32. Three MXU matmuls, f32 accumulation,
    # tanh + affine on the VPU/EUP in f32.
    x = x_ref[...]
    h1 = jnp.tanh(
        jnp.dot(x, w1_ref[...], preferred_element_type=jnp.float32) + b1_ref[...]
    )
    h2 = jnp.tanh(
        jnp.dot(h1.astype(jnp.bfloat16), w2_ref[...],
                preferred_element_type=jnp.float32) + b2_ref[...]
    )
    mean = jnp.tanh(
        jnp.dot(h2.astype(jnp.bfloat16), w3_ref[...],
                preferred_element_type=jnp.float32) + b3_ref[...]
    )
    # (1, A) scale/bias broadcast against (TB, A) — done once per grid step.
    out_ref[...] = mean * scale_ref[...] + bias_ref[...]


def deterministic_policy_forward(state, params, action_scale, action_bias,
                                 *, block_b=512):
    """state: (B, num_inputs) f32. Returns mean action (B, num_actions) f32."""
    w1, b1, w2, b2, w3, b3 = params
    B, num_inputs = state.shape
    hidden = w1.shape[1]
    num_actions = w3.shape[1]

    # Batch tile: sublane-aligned (multiple of 8), capped at block_b.
    TB = min(block_b, _round_up(B, 8))
    Bp = _round_up(B, TB)
    grid = (Bp // TB,)

    # Pad batch (zeros) so the grid tiles evenly; cast matmul operands to bf16
    # (halves state HBM traffic, bf16-native MXU). Biases/scale/bias stay f32.
    x = state.astype(jnp.bfloat16)
    if Bp != B:
        x = jnp.pad(x, ((0, Bp - B), (0, 0)))
    w1b = w1.astype(jnp.bfloat16)
    w2b = w2.astype(jnp.bfloat16)
    w3b = w3.astype(jnp.bfloat16)

    resident = lambda i: (0, 0)          # weights/biases/scale: fetched once
    batched = lambda i: (i, 0)           # state/output: tiled along batch

    flops = 2 * Bp * (num_inputs * hidden + hidden * hidden + hidden * num_actions)
    transcendentals = Bp * (2 * hidden + num_actions)
    bytes_accessed = (
        Bp * num_inputs * 2                              # state (bf16)
        + (num_inputs * hidden + hidden * hidden + hidden * num_actions) * 2  # weights
        + (2 * hidden + num_actions) * 4                 # biases
        + 2 * num_actions * 4                            # scale + bias
        + Bp * num_actions * 4                           # output (f32)
    )

    out = pl.pallas_call(
        _policy_kernel,
        out_shape=jax.ShapeDtypeStruct((Bp, num_actions), jnp.float32),
        grid=grid,
        in_specs=[
            pl.BlockSpec((1, num_actions), resident),        # action_scale
            pl.BlockSpec((1, num_actions), resident),        # action_bias
            pl.BlockSpec((TB, num_inputs), batched),         # state tile
            pl.BlockSpec((num_inputs, hidden), resident),    # w1
            pl.BlockSpec((1, hidden), resident),             # b1
            pl.BlockSpec((hidden, hidden), resident),        # w2
            pl.BlockSpec((1, hidden), resident),             # b2
            pl.BlockSpec((hidden, num_actions), resident),   # w3
            pl.BlockSpec((1, num_actions), resident),        # b3
        ],
        out_specs=pl.BlockSpec((TB, num_actions), batched),
        compiler_params=pltpu.CompilerParams(
            dimension_semantics=("parallel",),
        ),
        cost_estimate=pl.CostEstimate(
            flops=flops,
            transcendentals=transcendentals,
            bytes_accessed=bytes_accessed,
        ),
    )(action_scale, action_bias, x, w1b, b1, w2b, b2, w3b, b3)

    return out[:B]


def _xavier_uniform(key, fan_in, fan_out):
    # matches torch.nn.init.xavier_uniform_ (gain=1); stored transposed (in, out)
    limit = math.sqrt(6.0 / (fan_in + fan_out))
    return jax.random.uniform(key, (fan_in, fan_out), jnp.float32, -limit, limit)


def init_params(key, num_inputs, num_actions, hidden_dim):
    k1, k2, k3 = jax.random.split(key, 3)
    w1 = _xavier_uniform(k1, num_inputs, hidden_dim)
    b1 = jnp.zeros((1, hidden_dim), jnp.float32)
    w2 = _xavier_uniform(k2, hidden_dim, hidden_dim)
    b2 = jnp.zeros((1, hidden_dim), jnp.float32)
    w3 = _xavier_uniform(k3, hidden_dim, num_actions)
    b3 = jnp.zeros((1, num_actions), jnp.float32)
    return (w1, b1, w2, b2, w3, b3)


if __name__ == "__main__":
    # small shapes consistent with the module's forward
    batch = 4
    num_inputs = 16
    num_actions = 8
    hidden_dim = 32

    key = jax.random.PRNGKey(0)
    k_state, k_params = jax.random.split(key)

    state = jax.random.normal(k_state, (batch, num_inputs), jnp.float32)
    params = init_params(k_params, num_inputs, num_actions, hidden_dim)

    # action_space is None in this synthetic setup -> scale=1.0, bias=0.0
    action_scale = jnp.ones((1, num_actions), jnp.float32)
    action_bias = jnp.zeros((1, num_actions), jnp.float32)

    mean = deterministic_policy_forward(state, params, action_scale, action_bias)
    mean = jax.block_until_ready(mean)

    # pure-JAX reference with the same bf16 matmul precision as the kernel
    w1, b1, w2, b2, w3, b3 = params
    xb = state.astype(jnp.bfloat16)
    r1 = jnp.tanh(jnp.dot(xb, w1.astype(jnp.bfloat16),
                          preferred_element_type=jnp.float32) + b1)
    r2 = jnp.tanh(jnp.dot(r1.astype(jnp.bfloat16), w2.astype(jnp.bfloat16),
                          preferred_element_type=jnp.float32) + b2)
    ref = jnp.tanh(jnp.dot(r2.astype(jnp.bfloat16), w3.astype(jnp.bfloat16),
                           preferred_element_type=jnp.float32) + b3)
    ref = ref * action_scale + action_bias

    # full-f32 reference (module semantics) — bf16 matmuls stay within ~1e-2
    f1 = jnp.tanh(state @ w1 + b1)
    f2 = jnp.tanh(f1 @ w2 + b2)
    ref_f32 = jnp.tanh(f2 @ w3 + b3) * action_scale + action_bias

    assert mean.shape == (batch, num_actions)
    assert jnp.allclose(mean, ref, atol=1e-5, rtol=1e-5), "mismatch vs bf16 reference"
    assert jnp.allclose(mean, ref_f32, atol=2e-2, rtol=2e-2), "mismatch vs f32 reference"

    print("KERNEL_OK")
</pallas_src>

<mosaic_0001>
module attributes {stable_mosaic.version = 11 : i64} {
  func.func @_policy_kernel(%arg0: i32, %arg1: memref<1x8xf32, #tpu.memory_space<vmem>>, %arg2: memref<1x8xf32, #tpu.memory_space<vmem>>, %arg3: memref<8x16xbf16, #tpu.memory_space<vmem>>, %arg4: memref<16x32xbf16, #tpu.memory_space<vmem>>, %arg5: memref<1x32xf32, #tpu.memory_space<vmem>>, %arg6: memref<32x32xbf16, #tpu.memory_space<vmem>>, %arg7: memref<1x32xf32, #tpu.memory_space<vmem>>, %arg8: memref<32x8xbf16, #tpu.memory_space<vmem>>, %arg9: memref<1x8xf32, #tpu.memory_space<vmem>>, %arg10: memref<8x8xf32, #tpu.memory_space<vmem>>) attributes {dimension_semantics = [#tpu.dimension_semantics<parallel>], iteration_bounds = array<i64: 1>, scalar_prefetch = 0 : i64, scratch_operands = 0 : i64, tpu.core_type = #tpu.core_type<tc>, window_params = [{pipeline_mode = #tpu.pipeline_mode<synchronous>, transform_indices = @transform_0, window_bounds = array<i64: 1, 8>}, {pipeline_mode = #tpu.pipeline_mode<synchronous>, transform_indices = @transform_1, window_bounds = array<i64: 1, 8>}, {transform_indices = @transform_2, window_bounds = array<i64: 8, 16>}, {pipeline_mode = #tpu.pipeline_mode<synchronous>, transform_indices = @transform_3, window_bounds = array<i64: 16, 32>}, {pipeline_mode = #tpu.pipeline_mode<synchronous>, transform_indices = @transform_4, window_bounds = array<i64: 1, 32>}, {pipeline_mode = #tpu.pipeline_mode<synchronous>, transform_indices = @transform_5, window_bounds = array<i64: 32, 32>}, {pipeline_mode = #tpu.pipeline_mode<synchronous>, transform_indices = @transform_6, window_bounds = array<i64: 1, 32>}, {pipeline_mode = #tpu.pipeline_mode<synchronous>, transform_indices = @transform_7, window_bounds = array<i64: 32, 8>}, {pipeline_mode = #tpu.pipeline_mode<synchronous>, transform_indices = @transform_8, window_bounds = array<i64: 1, 8>}, {transform_indices = @transform_9, window_bounds = array<i64: 8, 8>}]} {
    %c0 = arith.constant 0 : index
    %c0_0 = arith.constant 0 : index
    %0 = vector.load %arg3[%c0, %c0_0] : memref<8x16xbf16, #tpu.memory_space<vmem>>, vector<8x16xbf16>
    %c0_1 = arith.constant 0 : index
    %c0_2 = arith.constant 0 : index
    %1 = vector.load %arg4[%c0_1, %c0_2] : memref<16x32xbf16, #tpu.memory_space<vmem>>, vector<16x32xbf16>
    %cst = arith.constant dense<0.000000e+00> : vector<8x32xf32>
    %2 = tpu.matmul %0, %1, %cst {dimension_numbers = #tpu.dot_dimension_numbers<[1], [0], [0], [1], [0, 0, 1, 1], [], []>} : vector<8x16xbf16>, vector<16x32xbf16>, vector<8x32xf32> -> vector<8x32xf32>
    %c0_3 = arith.constant 0 : index
    %c0_4 = arith.constant 0 : index
    %3 = vector.load %arg5[%c0_3, %c0_4] : memref<1x32xf32, #tpu.memory_space<vmem>>, vector<1x32xf32>
    %4 = vector.broadcast %3 : vector<1x32xf32> to vector<8x32xf32>
    %5 = arith.addf %2, %4 : vector<8x32xf32>
    %6 = math.tanh %5 : vector<8x32xf32>
    %7 = arith.truncf %6 : vector<8x32xf32> to vector<8x32xbf16>
    %c0_5 = arith.constant 0 : index
    %c0_6 = arith.constant 0 : index
    %8 = vector.load %arg6[%c0_5, %c0_6] : memref<32x32xbf16, #tpu.memory_space<vmem>>, vector<32x32xbf16>
    %cst_7 = arith.constant dense<0.000000e+00> : vector<8x32xf32>
    %9 = tpu.matmul %7, %8, %cst_7 {dimension_numbers = #tpu.dot_dimension_numbers<[1], [0], [0], [1], [0, 0, 1, 1], [], []>} : vector<8x32xbf16>, vector<32x32xbf16>, vector<8x32xf32> -> vector<8x32xf32>
    %c0_8 = arith.constant 0 : index
    %c0_9 = arith.constant 0 : index
    %10 = vector.load %arg7[%c0_8, %c0_9] : memref<1x32xf32, #tpu.memory_space<vmem>>, vector<1x32xf32>
    %11 = vector.broadcast %10 : vector<1x32xf32> to vector<8x32xf32>
    %12 = arith.addf %9, %11 : vector<8x32xf32>
    %13 = math.tanh %12 : vector<8x32xf32>
    %14 = arith.truncf %13 : vector<8x32xf32> to vector<8x32xbf16>
    %c0_10 = arith.constant 0 : index
    %c0_11 = arith.constant 0 : index
    %15 = vector.load %arg8[%c0_10, %c0_11] : memref<32x8xbf16, #tpu.memory_space<vmem>>, vector<32x8xbf16>
    %cst_12 = arith.constant dense<0.000000e+00> : vector<8x8xf32>
    %16 = tpu.matmul %14, %15, %cst_12 {dimension_numbers = #tpu.dot_dimension_numbers<[1], [0], [0], [1], [0, 0, 1, 1], [], []>} : vector<8x32xbf16>, vector<32x8xbf16>, vector<8x8xf32> -> vector<8x8xf32>
    %c0_13 = arith.constant 0 : index
    %c0_14 = arith.constant 0 : index
    %17 = vector.load %arg9[%c0_13, %c0_14] : memref<1x8xf32, #tpu.memory_space<vmem>>, vector<1x8xf32>
    %18 = vector.broadcast %17 : vector<1x8xf32> to vector<8x8xf32>
    %19 = arith.addf %16, %18 : vector<8x8xf32>
    %20 = math.tanh %19 : vector<8x8xf32>
    %c0_15 = arith.constant 0 : index
    %c0_16 = arith.constant 0 : index
    %21 = vector.load %arg1[%c0_15, %c0_16] : memref<1x8xf32, #tpu.memory_space<vmem>>, vector<1x8xf32>
    %22 = vector.broadcast %21 : vector<1x8xf32> to vector<8x8xf32>
    %23 = arith.mulf %20, %22 : vector<8x8xf32>
    %c0_17 = arith.constant 0 : index
    %c0_18 = arith.constant 0 : index
    %24 = vector.load %arg2[%c0_17, %c0_18] : memref<1x8xf32, #tpu.memory_space<vmem>>, vector<1x8xf32>
    %25 = vector.broadcast %24 : vector<1x8xf32> to vector<8x8xf32>
    %26 = arith.addf %23, %25 : vector<8x8xf32>
    %c0_19 = arith.constant 0 : index
    %c0_20 = arith.constant 0 : index
    %27 = vector.load %arg10[%c0_19, %c0_20] : memref<8x8xf32, #tpu.memory_space<vmem>>, vector<8x8xf32>
    tpu.vector_store %arg10[%c0_19, %c0_20], %26 {strides = array<i32>} : memref<8x8xf32, #tpu.memory_space<vmem>>, vector<8x8xf32>,
    return
  }
  func.func @transform_0(%arg0: i32) -> (i32, i32) {
    %c0_i32 = arith.constant 0 : i32
    %c0_i32_0 = arith.constant 0 : i32
    %c0_i32_1 = arith.constant 0 : i32
    return %c0_i32, %c0_i32_0 : i32, i32
  }
  func.func @transform_1(%arg0: i32) -> (i32, i32) {
    %c0_i32 = arith.constant 0 : i32
    %c0_i32_0 = arith.constant 0 : i32
    %c0_i32_1 = arith.constant 0 : i32
    return %c0_i32, %c0_i32_0 : i32, i32
  }
  func.func @transform_2(%arg0: i32) -> (i32, i32) {
    %c0_i32 = arith.constant 0 : i32
    %c0_i32_0 = arith.constant 0 : i32
    return %arg0, %c0_i32 : i32, i32
  }
  func.func @transform_3(%arg0: i32) -> (i32, i32) {
    %c0_i32 = arith.constant 0 : i32
    %c0_i32_0 = arith.constant 0 : i32
    %c0_i32_1 = arith.constant 0 : i32
    return %c0_i32, %c0_i32_0 : i32, i32
  }
  func.func @transform_4(%arg0: i32) -> (i32, i32) {
    %c0_i32 = arith.constant 0 : i32
    %c0_i32_0 = arith.constant 0 : i32
    %c0_i32_1 = arith.constant 0 : i32
    return %c0_i32, %c0_i32_0 : i32, i32
  }
  func.func @transform_5(%arg0: i32) -> (i32, i32) {
    %c0_i32 = arith.constant 0 : i32
    %c0_i32_0 = arith.constant 0 : i32
    %c0_i32_1 = arith.constant 0 : i32
    return %c0_i32, %c0_i32_0 : i32, i32
  }
  func.func @transform_6(%arg0: i32) -> (i32, i32) {
    %c0_i32 = arith.constant 0 : i32
    %c0_i32_0 = arith.constant 0 : i32
    %c0_i32_1 = arith.constant 0 : i32
    return %c0_i32, %c0_i32_0 : i32, i32
  }
  func.func @transform_7(%arg0: i32) -> (i32, i32) {
    %c0_i32 = arith.constant 0 : i32
    %c0_i32_0 = arith.constant 0 : i32
    %c0_i32_1 = arith.constant 0 : i32
    return %c0_i32, %c0_i32_0 : i32, i32
  }
  func.func @transform_8(%arg0: i32) -> (i32, i32) {
    %c0_i32 = arith.constant 0 : i32
    %c0_i32_0 = arith.constant 0 : i32
    %c0_i32_1 = arith.constant 0 : i32
    return %c0_i32, %c0_i32_0 : i32, i32
  }
  func.func @transform_9(%arg0: i32) -> (i32, i32) {
    %c0_i32 = arith.constant 0 : i32
    %c0_i32_0 = arith.constant 0 : i32
    return %arg0, %c0_i32 : i32, i32
  }
}

</mosaic_0001>

<llo_original>
// kernel: tpu_custom_call.1
$region0: #{tpu_custom_call.1}
  #allocation0 [shape = 'u32[]', space=smem, size = 0x4, offset = 0x4, fixed_abs, tag = 'smem constant byte address 0x4 - core index']
  #allocation1 [shape = 'u32[72,128]{1,0:T(1,128)}', space=vmem, size = 0x9000, scoped, tag = 'internal scratch']
  %s0 = inlined_call_operand.hbm [shape: f32[1,8], index: 0, kind: input, shape index: {}]
  %s1 = inlined_call_operand.hbm [shape: f32[1,8], index: 1, kind: input, shape index: {}]
  %s2 = inlined_call_operand.hbm [shape: bf16[8,16], index: 2, kind: input, shape index: {}]
  %s3 = inlined_call_operand.vmem [shape: bf16[16,32], index: 3, kind: input, shape index: {}]
  %s4 = inlined_call_operand.hbm [shape: f32[1,32], index: 4, kind: input, shape index: {}]
  %s5 = inlined_call_operand.vmem [shape: bf16[32,32], index: 5, kind: input, shape index: {}]
  %s6 = inlined_call_operand.vmem [shape: f32[1,32], index: 6, kind: input, shape index: {}]
  %s7 = inlined_call_operand.vmem [shape: bf16[32,8], index: 7, kind: input, shape index: {}]
  %s8 = inlined_call_operand.vmem [shape: f32[1,8], index: 8, kind: input, shape index: {}]
  %s9 = inlined_call_operand.hbm [shape: f32[8,8], index: 9, kind: output, shape index: {}]
  %s10 = sld [smem:[#allocation0]]
  $region62: #{tpu_custom_call.1} parent=0
    _
  %s12 = ssub.s32 1, %s10
  %s13 = scalar_select 0, %s12, %s10
  $region1: #{tpu_custom_call.1} parent=0
    #allocation2 [shape = 'u8[512]{0}', space=vmem, size = 0x400, scoped, tag = 'input window, operand 0, single buffered']
    #allocation3 [shape = 's32[1]{0}', space=sflag, size = 0x4, scoped, tag = 'scoped memory for tpu_custom_call.1']
    #allocation4 [shape = 's32[1]{0}', space=sflag, size = 0x4, scoped, tag = 'scoped memory for tpu_custom_call.1']
    #allocation5 [shape = 'u8[512]{0}', space=vmem, size = 0x400, scoped, tag = 'input window, operand 1, single buffered']
    #allocation6 [shape = 's32[1]{0}', space=sflag, size = 0x4, scoped, tag = 'scoped memory for tpu_custom_call.1']
    #allocation7 [shape = 'u8[2048]{0}', space=vmem, size = 0x800, scoped, tag = 'input window, operand 2, single buffered']
    #allocation8 [shape = 'u8[512]{0}', space=vmem, size = 0x400, scoped, tag = 'input window, operand 4, single buffered']
    #allocation9 [shape = 's32[1]{0}', space=sflag, size = 0x4, scoped, tag = 'scoped memory for tpu_custom_call.1']
    #allocation10 [shape = 'u8[4096]{0}', space=vmem, size = 0x1000, scoped, tag = 'output window, operand 0, single buffered']
    %14 = vsyncpa [#allocation3], 0
    %15 = vsyncpa [#allocation6], 0
    %16 = vsyncpa [#allocation9], 0
    %17 = vsyncpa [#allocation4], 0
    // Predicated region
    $region2: #{tpu_custom_call.1} parent=1 // pred_check
      _
    $region3: #{tpu_custom_call.1} parent=1 // pred_check_branch
      %19 = sbr.rel (0) target = $region5
    $region4: #{tpu_custom_call.1} parent=1 // pred_region
      %21 = vsyncadd [#allocation3], 0
      %s23 = sshll.u32 %s0, 4
      %s24 = int_to_ptr.hbm [resolvable:$true] %s23
      %s25 = sshll.u32 [#allocation2], 4
      %s26 = int_to_ptr.vmem [resolvable:$true] %s25
      %28 = dma.hbm_to_vmem [thread:$0]  %s24, 16, %s26, [#allocation3]
    $region5: #{tpu_custom_call.1} parent=1 // pred_fallthru
      _
    // Predicated region
    $region6: #{tpu_custom_call.1} parent=1 // pred_check
      _
    $region7: #{tpu_custom_call.1} parent=1 // pred_check_branch
      %30 = sbr.rel (0) target = $region9
    $region8: #{tpu_custom_call.1} parent=1 // pred_region
      %32 = vsyncadd [#allocation6], 0
      %s34 = sshll.u32 %s1, 4
      %s35 = int_to_ptr.hbm [resolvable:$true] %s34
      %s36 = sshll.u32 [#allocation5], 4
      %s37 = int_to_ptr.vmem [resolvable:$true] %s36
      %39 = dma.hbm_to_vmem [thread:$0]  %s35, 16, %s37, [#allocation6]
    $region9: #{tpu_custom_call.1} parent=1 // pred_fallthru
      _
    // Predicated region
    $region10: #{tpu_custom_call.1} parent=1 // pred_check
      _
    $region11: #{tpu_custom_call.1} parent=1 // pred_check_branch
      %41 = sbr.rel (0) target = $region13
    $region12: #{tpu_custom_call.1} parent=1 // pred_region
      %43 = vsyncadd [#allocation6], 0
      %s45 = sshll.u32 %s2, 4
      %s46 = int_to_ptr.hbm [resolvable:$true] %s45
      %s47 = sshll.u32 [#allocation7], 4
      %s48 = int_to_ptr.vmem [resolvable:$true] %s47
      %50 = dma.hbm_to_vmem [thread:$0]  %s46, 64, %s48, [#allocation6]
    $region13: #{tpu_custom_call.1} parent=1 // pred_fallthru
      _
    // Predicated region
    $region14: #{tpu_custom_call.1} parent=1 // pred_check
      _
    $region15: #{tpu_custom_call.1} parent=1 // pred_check_branch
      %52 = sbr.rel (0) target = $region17
    $region16: #{tpu_custom_call.1} parent=1 // pred_region
      _
    $region17: #{tpu_custom_call.1} parent=1 // pred_fallthru
      _
    // Predicated region
    $region18: #{tpu_custom_call.1} parent=1 // pred_check
      _
    $region19: #{tpu_custom_call.1} parent=1 // pred_check_branch
      %54 = sbr.rel (0) target = $region21
    $region20: #{tpu_custom_call.1} parent=1 // pred_region
      %56 = vsyncadd [#allocation9], 0
      %s58 = sshll.u32 %s4, 4
      %s59 = int_to_ptr.hbm [resolvable:$true] %s58
      %s60 = sshll.u32 [#allocation8], 4
      %s61 = int_to_ptr.vmem [resolvable:$true] %s60
      %63 = dma.hbm_to_vmem [thread:$0]  %s59, 16, %s61, [#allocation9]
    $region21: #{tpu_custom_call.1} parent=1 // pred_fallthru
      _
    // Predicated region
    $region22: #{tpu_custom_call.1} parent=1 // pred_check
      _
    $region23: #{tpu_custom_call.1} parent=1 // pred_check_branch
      %65 = sbr.rel (0) target = $region25
    $region24: #{tpu_custom_call.1} parent=1 // pred_region
      _
    $region25: #{tpu_custom_call.1} parent=1 // pred_fallthru
      _
    // Predicated region
    $region26: #{tpu_custom_call.1} parent=1 // pred_check
      _
    $region27: #{tpu_custom_call.1} parent=1 // pred_check_branch
      %67 = sbr.rel (0) target = $region29
    $region28: #{tpu_custom_call.1} parent=1 // pred_region
      _
    $region29: #{tpu_custom_call.1} parent=1 // pred_fallthru
      _
    // Predicated region
    $region30: #{tpu_custom_call.1} parent=1 // pred_check
      _
    $region31: #{tpu_custom_call.1} parent=1 // pred_check_branch
      %69 = sbr.rel (0) target = $region33
    $region32: #{tpu_custom_call.1} parent=1 // pred_region
      _
    $region33: #{tpu_custom_call.1} parent=1 // pred_fallthru
      _
    // Predicated region
    $region34: #{tpu_custom_call.1} parent=1 // pred_check
      _
    $region35: #{tpu_custom_call.1} parent=1 // pred_check_branch
      %71 = sbr.rel (0) target = $region37
    $region36: #{tpu_custom_call.1} parent=1 // pred_region
      _
    $region37: #{tpu_custom_call.1} parent=1 // pred_fallthru
      _
    // Predicated region
    $region38: #{tpu_custom_call.1} parent=1 // pred_check
      _
    $region39: #{tpu_custom_call.1} parent=1 // pred_check_branch
      %73 = sbr.rel (0) target = $region41
    $region40: #{tpu_custom_call.1} parent=1 // pred_region
      %75 = dma.done [#allocation3], 16
    $region41: #{tpu_custom_call.1} parent=1 // pred_fallthru
      _
    // Predicated region
    $region42: #{tpu_custom_call.1} parent=1 // pred_check
      _
    $region43: #{tpu_custom_call.1} parent=1 // pred_check_branch
      %77 = sbr.rel (0) target = $region45
    $region44: #{tpu_custom_call.1} parent=1 // pred_region
      %79 = dma.done [#allocation6], 16
    $region45: #{tpu_custom_call.1} parent=1 // pred_fallthru
      _
    // Predicated region
    $region46: #{tpu_custom_call.1} parent=1 // pred_check
      _
    $region47: #{tpu_custom_call.1} parent=1 // pred_check_branch
      %81 = sbr.rel (0) target = $region49
    $region48: #{tpu_custom_call.1} parent=1 // pred_region
      %83 = dma.done [#allocation6], 64
    $region49: #{tpu_custom_call.1} parent=1 // pred_fallthru
      _
    // Predicated region
    $region50: #{tpu_custom_call.1} parent=1 // pred_check
      _
    $region51: #{tpu_custom_call.1} parent=1 // pred_check_branch
      %85 = sbr.rel (0) target = $region53
    $region52: #{tpu_custom_call.1} parent=1 // pred_region
      %87 = dma.done [#allocation9], 16
    $region53: #{tpu_custom_call.1} parent=1 // pred_fallthru
      _
    %v89 = vld [vmem:[#allocation7] sm:$0xf]
    %v90 = vld [vmem:[%s3] sm:$0xf]
    %v91 = vld [vmem:[%s3 + $0x4] sm:$0xf]
    %v92 = vld [vmem:[#allocation8] sm:$0x1]
    %v94 = vperm.slane %v92, 0
    %v98 = vunpack.c.l.b16 %v90
    %v99 = vunpack.c.l.b16 %v91
    %v100 = vpack.c.b16 %v99, %v98
    %vm102 = vcmask 130048
    %v104 = vsel %vm102, %v89, 0
    %106 = vmatpush.bf16.msra.mxu0 0
    %107 = vmatpush.bf16.msra.mxu0 0
    %108 = vmatpush.bf16.msra.mxu0 0
    %109 = vmatpush.bf16.msra.mxu0 0
    %110 = vmatpush.bf16.msra.mxu0 0
    %111 = vmatpush.bf16.msra.mxu0 0
    %112 = vmatpush.bf16.msra.mxu0 0
    %113 = vmatpush.bf16.msra.mxu0 %v100
    %114 = vmatmul.bf16.gmra.mxu0 %v104
    %v115 = vpop.f32.mrf.mxu0
    %v116 = vadd.f32 %v94, %v115
    %v117 = vpop.f32.mrf.mxu0
    %118 = vdwg.mxu0
    %v119 = vtanh.pop %v116
    %v120 = vpack.c.bf16 %v119, %v119
    %v121 = vld [vmem:[%s5] sm:$0xf]
    %v122 = vld [vmem:[%s5 + $0x4] sm:$0xf]
    %v123 = vld [vmem:[%s5 + $0x8] sm:$0xf]
    %v124 = vld [vmem:[%s5 + $0xc] sm:$0xf]
    %v125 = vld [vmem:[%s6] sm:$0x1]
    %v127 = vperm.slane %v125, 0
    %v133 = vunpack.c.l.b16 %v121
    %v134 = vunpack.c.l.b16 %v122
    %v135 = vunpack.c.l.b16 %v123
    %v136 = vunpack.c.l.b16 %v124
    %v137 = vpack.c.b16 %v134, %v133
    %v138 = vpack.c.b16 %v136, %v135
    %vm141 = vcmask 261120
    %v143 = vsel %vm141, %v120, 0
    %145 = vmatpush.bf16.msra.mxu0 0
    %146 = vmatpush.bf16.msra.mxu0 0
    %147 = vmatpush.bf16.msra.mxu0 0
    %148 = vmatpush.bf16.msra.mxu0 0
    %149 = vmatpush.bf16.msra.mxu0 0
    %150 = vmatpush.bf16.msra.mxu0 0
    %151 = vmatpush.bf16.msra.mxu0 %v138
    %152 = vmatpush.bf16.msra.mxu0 %v137
    %153 = vmatmul.bf16.gmra.mxu0 %v143
    %v154 = vpop.f32.mrf.mxu0
    %v155 = vadd.f32 %v127, %v154
    %v156 = vpop.f32.mrf.mxu0
    %157 = vdwg.mxu0
    %v158 = vtanh.pop %v155
    %v159 = vpack.c.bf16 %v158, %v158
    %v160 = vld [vmem:[%s7] sm:$0xf]
    %v161 = vld [vmem:[%s7 + $0x4] sm:$0xf]
    %v162 = vld [vmem:[%s7 + $0x8] sm:$0xf]
    %v163 = vld [vmem:[%s7 + $0xc] sm:$0xf]
    %v164 = vld [vmem:[%s8] sm:$0x1]
    %v166 = vperm.slane %v164, 0
    %v172 = vunpack.c.l.b16 %v160
    %v173 = vunpack.c.l.b16 %v161
    %v174 = vunpack.c.l.b16 %v162
    %v175 = vunpack.c.l.b16 %v163
    %v176 = vpack.c.b16 %v173, %v172
    %v177 = vpack.c.b16 %v175, %v174
    %v181 = vsel %vm141, %v159, 0
    %183 = vmatpush.bf16.msra.mxu0 0
    %184 = vmatpush.bf16.msra.mxu0 0
    %185 = vmatpush.bf16.msra.mxu0 0
    %186 = vmatpush.bf16.msra.mxu0 0
    %187 = vmatpush.bf16.msra.mxu0 0
    %188 = vmatpush.bf16.msra.mxu0 0
    %189 = vmatpush.bf16.msra.mxu0 %v177
    %190 = vmatpush.bf16.msra.mxu0 %v176
    %191 = vmatmul.bf16.gmra.mxu0 %v181
    %v192 = vpop.f32.mrf.mxu0
    %v193 = vadd.f32 %v166, %v192
    %v194 = vpop.f32.mrf.mxu0
    %195 = vdwg.mxu0
    %v196 = vtanh.pop %v193
    %v197 = vld [vmem:[#allocation2] sm:$0x1]
    %v199 = vperm.slane %v197, 0
    %v201 = vmul.f32 %v196, %v199
    %v202 = vld [vmem:[#allocation5] sm:$0x1]
    %v204 = vperm.slane %v202, 0
    %v206 = vadd.f32 %v201, %v204
    %vm207 = vcmask 64512
    %208 = vst.msk [vmem:[#allocation10] sm:$0xff] %vm207, %v206
    // Predicated region
    $region54: #{tpu_custom_call.1} parent=1 // pred_check
      _
    $region55: #{tpu_custom_call.1} parent=1 // pred_check_branch
      %210 = sbr.rel (0) target = $region57
    $region56: #{tpu_custom_call.1} parent=1 // pred_region
      %212 = vsyncadd [#allocation4], 0
      %s214 = sshll.u32 [#allocation10], 4
      %s215 = int_to_ptr.vmem [resolvable:$true] %s214
      %s216 = sshll.u32 %s9, 4
      %s217 = int_to_ptr.hbm [resolvable:$true] %s216
      %219 = dma.vmem_to_hbm [thread:$0]  %s215, 128, %s217, [#allocation4]
    $region57: #{tpu_custom_call.1} parent=1 // pred_fallthru
      _
    // Predicated region
    $region58: #{tpu_custom_call.1} parent=1 // pred_check
      _
    $region59: #{tpu_custom_call.1} parent=1 // pred_check_branch
      %221 = sbr.rel (0) target = $region61
    $region60: #{tpu_custom_call.1} parent=1 // pred_region
      %223 = dma.done [#allocation4], 128
    $region61: #{tpu_custom_call.1} parent=1 // pred_fallthru
      _
    %224 = vsyncpa [#allocation3], 1
    %225 = vsyncpa [#allocation6], 1
    %226 = vsyncpa [#allocation9], 1
    %227 = vsyncpa [#allocation4], 1

</llo_original>
